<compile_context>
chip_gen: v5e
topology: v5e:2x2
jax: 0.10.0
libtpu: 0.0.40
codegen_flags: <defaults>
</compile_context>

<pallas_src>
import math

import jax
import jax.numpy as jnp
from jax import lax
from jax.experimental import pallas as pl
from jax.experimental.pallas import tpu as pltpu


def _round_up(x, m):
    return ((x + m - 1) // m) * m


def qnet_kernel(s_ref, a_ref, w1s_ref, w1a_ref, b1_ref, w2_ref, b2_ref,
                w3t_ref, b3_ref, o_ref):
    # s_ref: [TB, S]   a_ref: [TB, A]                       (bf16/f32)
    # w1s: [S, H1]  w1a: [A, H1]  w2: [H1, H2]  w3t: [1, H2] (bf16/f32, resident)
    # b1: [1, H1]   b2: [1, H2]   b3: [1, 1]                 (f32, resident)
    # o_ref: [1, TB]                                         (f32, lane-dense)

    # Layer 1: split-K matmul == Linear over concat([state, action], -1).
    h1 = jnp.dot(s_ref[...], w1s_ref[...], preferred_element_type=jnp.float32)
    h1 = h1 + jnp.dot(a_ref[...], w1a_ref[...],
                      preferred_element_type=jnp.float32)
    h1 = jnp.maximum(h1 + b1_ref[...], 0.0)                  # ReLU in f32

    # Layer 2.
    h2 = jnp.dot(h1.astype(w2_ref.dtype), w2_ref[...],
                 preferred_element_type=jnp.float32)
    h2 = jnp.maximum(h2 + b2_ref[...], 0.0)                  # ReLU in f32

    # Layer 3 (output width 1), computed transposed so the result comes out as
    # a lane-dense (1, TB) row:  q = W3^T[1,H2] . h2^T[H2,TB]  (trans_b matmul).
    q = lax.dot_general(w3t_ref[...], h2.astype(w3t_ref.dtype),
                        (((1,), (1,)), ((), ())),
                        preferred_element_type=jnp.float32)
    o_ref[...] = (q + b3_ref[...]).astype(o_ref.dtype)       # Identity head


def qnetwork_forward(state, action, params, *, tile_b=256,
                     compute_dtype=jnp.bfloat16):
    """Pallas forward of QNetwork: returns q with shape [B]."""
    w1, b1, w2, b2, w3, b3 = params
    B, S = state.shape
    A = action.shape[-1]
    H1, H2 = w1.shape[1], w2.shape[1]

    # Split W1 so concat(state, action) never materializes; transpose W3 so the
    # last layer yields a lane-dense (1, TB) tile. Matmul operands go to the
    # compute dtype (bf16 default); accumulation stays f32 inside the kernel.
    w1_s = w1[:S].astype(compute_dtype)
    w1_a = w1[S:].astype(compute_dtype)
    w2_c = w2.astype(compute_dtype)
    w3_t = w3.reshape(1, H2).astype(compute_dtype)
    s = state.astype(compute_dtype)
    a = action.astype(compute_dtype)

    # Batch tiling: one grid step per tile_b rows; weights stay VMEM-resident.
    if B > tile_b:
        tb = tile_b                       # multiple of 128 -> dense output store
        num_tiles = (B + tb - 1) // tb
    else:
        tb = max(8, _round_up(B, 8))      # single tile, full-array blocks
        num_tiles = 1
    b_pad = num_tiles * tb
    if b_pad != B:
        s = jnp.pad(s, ((0, b_pad - B), (0, 0)))
        a = jnp.pad(a, ((0, b_pad - B), (0, 0)))

    resident = lambda i: (0, 0)           # same block every grid step -> no re-DMA
    out = pl.pallas_call(
        qnet_kernel,
        out_shape=jax.ShapeDtypeStruct((1, b_pad), jnp.float32),
        grid=(num_tiles,),
        in_specs=[
            pl.BlockSpec((tb, S), lambda i: (i, 0)),    # state tile (pipelined)
            pl.BlockSpec((tb, A), lambda i: (i, 0)),    # action tile (pipelined)
            pl.BlockSpec((S, H1), resident),            # W1[:S]
            pl.BlockSpec((A, H1), resident),            # W1[S:]
            pl.BlockSpec((1, H1), resident),            # b1
            pl.BlockSpec((H1, H2), resident),           # W2
            pl.BlockSpec((1, H2), resident),            # b2
            pl.BlockSpec((1, H2), resident),            # W3^T
            pl.BlockSpec((1, 1), resident),             # b3
        ],
        out_specs=pl.BlockSpec((1, tb), lambda i: (0, i)),  # lane-dense q row
        compiler_params=pltpu.CompilerParams(
            dimension_semantics=("parallel",)),
    )(s, a, w1_s, w1_a, b1, w2_c, b2, w3_t, b3)
    return out[0, :B]


def init_qnetwork_params(key, state_size, action_size, hidden_sizes=(256, 256)):
    """nn.Linear default init (U(-1/sqrt(fan_in), +1/sqrt(fan_in))).
    Weights stored [in, out] (transposed vs torch), biases [1, out]."""
    sizes = [state_size + action_size] + list(hidden_sizes) + [1]
    params = []
    for j in range(len(sizes) - 1):
        fan_in, fan_out = sizes[j], sizes[j + 1]
        key, kw, kb = jax.random.split(key, 3)
        bound = 1.0 / math.sqrt(fan_in)
        w = jax.random.uniform(kw, (fan_in, fan_out), jnp.float32, -bound, bound)
        b = jax.random.uniform(kb, (1, fan_out), jnp.float32, -bound, bound)
        params += [w, b]
    return tuple(params)


def qnetwork_reference(state, action, params, compute_dtype=jnp.float32):
    """Pure-JAX reference mirroring the kernel math (operand dtype selectable,
    accumulation always f32)."""
    w1, b1, w2, b2, w3, b3 = params
    S = state.shape[-1]
    cd = compute_dtype
    h1 = (jnp.dot(state.astype(cd), w1[:S].astype(cd),
                  preferred_element_type=jnp.float32)
          + jnp.dot(action.astype(cd), w1[S:].astype(cd),
                    preferred_element_type=jnp.float32))
    h1 = jnp.maximum(h1 + b1, 0.0)
    h2 = jnp.dot(h1.astype(cd), w2.astype(cd),
                 preferred_element_type=jnp.float32)
    h2 = jnp.maximum(h2 + b2, 0.0)
    q = jnp.dot(h2.astype(cd), w3.astype(cd),
                preferred_element_type=jnp.float32) + b3
    return q.squeeze(-1)


if __name__ == "__main__":
    key = jax.random.PRNGKey(0)
    k_s, k_a, k_p = jax.random.split(key, 3)

    batch, state_size, action_size = 8, 12, 4
    hidden_sizes = (256, 256)   # matches the PyTorch module's default widths

    state = jax.random.normal(k_s, (batch, state_size), jnp.float32)
    action = jax.random.normal(k_a, (batch, action_size), jnp.float32)
    params = init_qnetwork_params(k_p, state_size, action_size, hidden_sizes)

    q = qnetwork_forward(state, action, params)
    q = jax.block_until_ready(q)
    assert q.shape == (batch,), q.shape

    # Tight check against a reference that mirrors the kernel's bf16-operand /
    # f32-accumulation path ...
    q_bf16_ref = qnetwork_reference(state, action, params, jnp.bfloat16)
    assert jnp.allclose(q, q_bf16_ref, atol=1e-4, rtol=1e-4), (q, q_bf16_ref)
    # ... and a loose sanity check against the full-f32 math of the torch module.
    q_f32_ref = qnetwork_reference(state, action, params, jnp.float32)
    assert jnp.allclose(q, q_f32_ref, atol=2e-2, rtol=2e-2), (q, q_f32_ref)

    print("KERNEL_OK")
</pallas_src>

<mosaic_0001>
module attributes {stable_mosaic.version = 11 : i64} {
  func.func @qnet_kernel(%arg0: i32, %arg1: memref<8x12xbf16, #tpu.memory_space<vmem>>, %arg2: memref<8x4xbf16, #tpu.memory_space<vmem>>, %arg3: memref<12x256xbf16, #tpu.memory_space<vmem>>, %arg4: memref<4x256xbf16, #tpu.memory_space<vmem>>, %arg5: memref<1x256xf32, #tpu.memory_space<vmem>>, %arg6: memref<256x256xbf16, #tpu.memory_space<vmem>>, %arg7: memref<1x256xf32, #tpu.memory_space<vmem>>, %arg8: memref<1x256xbf16, #tpu.memory_space<vmem>>, %arg9: memref<1x1xf32, #tpu.memory_space<vmem>>, %arg10: memref<1x8xf32, #tpu.memory_space<vmem>>) attributes {dimension_semantics = [#tpu.dimension_semantics<parallel>], iteration_bounds = array<i64: 1>, scalar_prefetch = 0 : i64, scratch_operands = 0 : i64, tpu.core_type = #tpu.core_type<tc>, window_params = [{transform_indices = @transform_0, window_bounds = array<i64: 8, 12>}, {transform_indices = @transform_1, window_bounds = array<i64: 8, 4>}, {pipeline_mode = #tpu.pipeline_mode<synchronous>, transform_indices = @transform_2, window_bounds = array<i64: 12, 256>}, {pipeline_mode = #tpu.pipeline_mode<synchronous>, transform_indices = @transform_3, window_bounds = array<i64: 4, 256>}, {pipeline_mode = #tpu.pipeline_mode<synchronous>, transform_indices = @transform_4, window_bounds = array<i64: 1, 256>}, {pipeline_mode = #tpu.pipeline_mode<synchronous>, transform_indices = @transform_5, window_bounds = array<i64: 256, 256>}, {pipeline_mode = #tpu.pipeline_mode<synchronous>, transform_indices = @transform_6, window_bounds = array<i64: 1, 256>}, {pipeline_mode = #tpu.pipeline_mode<synchronous>, transform_indices = @transform_7, window_bounds = array<i64: 1, 256>}, {pipeline_mode = #tpu.pipeline_mode<synchronous>, transform_indices = @transform_8, window_bounds = array<i64: 1, 1>}, {transform_indices = @transform_9, window_bounds = array<i64: 1, 8>}]} {
    %c0 = arith.constant 0 : index
    %c0_0 = arith.constant 0 : index
    %0 = vector.load %arg1[%c0, %c0_0] : memref<8x12xbf16, #tpu.memory_space<vmem>>, vector<8x12xbf16>
    %c0_1 = arith.constant 0 : index
    %c0_2 = arith.constant 0 : index
    %1 = vector.load %arg3[%c0_1, %c0_2] : memref<12x256xbf16, #tpu.memory_space<vmem>>, vector<12x256xbf16>
    %cst = arith.constant dense<0.000000e+00> : vector<8x256xf32>
    %2 = tpu.matmul %0, %1, %cst {dimension_numbers = #tpu.dot_dimension_numbers<[1], [0], [0], [1], [0, 0, 1, 1], [], []>} : vector<8x12xbf16>, vector<12x256xbf16>, vector<8x256xf32> -> vector<8x256xf32>
    %c0_3 = arith.constant 0 : index
    %c0_4 = arith.constant 0 : index
    %3 = vector.load %arg2[%c0_3, %c0_4] : memref<8x4xbf16, #tpu.memory_space<vmem>>, vector<8x4xbf16>
    %c0_5 = arith.constant 0 : index
    %c0_6 = arith.constant 0 : index
    %4 = vector.load %arg4[%c0_5, %c0_6] : memref<4x256xbf16, #tpu.memory_space<vmem>>, vector<4x256xbf16>
    %cst_7 = arith.constant dense<0.000000e+00> : vector<8x256xf32>
    %5 = tpu.matmul %3, %4, %cst_7 {dimension_numbers = #tpu.dot_dimension_numbers<[1], [0], [0], [1], [0, 0, 1, 1], [], []>} : vector<8x4xbf16>, vector<4x256xbf16>, vector<8x256xf32> -> vector<8x256xf32>
    %6 = arith.addf %2, %5 : vector<8x256xf32>
    %c0_8 = arith.constant 0 : index
    %c0_9 = arith.constant 0 : index
    %7 = vector.load %arg5[%c0_8, %c0_9] : memref<1x256xf32, #tpu.memory_space<vmem>>, vector<1x256xf32>
    %8 = vector.broadcast %7 : vector<1x256xf32> to vector<8x256xf32>
    %9 = arith.addf %6, %8 : vector<8x256xf32>
    %cst_10 = arith.constant 0.000000e+00 : f32
    %10 = vector.broadcast %cst_10 : f32 to vector<8x256xf32>
    %11 = arith.maximumf %9, %10 : vector<8x256xf32>
    %12 = arith.truncf %11 : vector<8x256xf32> to vector<8x256xbf16>
    %c0_11 = arith.constant 0 : index
    %c0_12 = arith.constant 0 : index
    %13 = vector.load %arg6[%c0_11, %c0_12] : memref<256x256xbf16, #tpu.memory_space<vmem>>, vector<256x256xbf16>
    %cst_13 = arith.constant dense<0.000000e+00> : vector<8x256xf32>
    %14 = tpu.matmul %12, %13, %cst_13 {dimension_numbers = #tpu.dot_dimension_numbers<[1], [0], [0], [1], [0, 0, 1, 1], [], []>} : vector<8x256xbf16>, vector<256x256xbf16>, vector<8x256xf32> -> vector<8x256xf32>
    %c0_14 = arith.constant 0 : index
    %c0_15 = arith.constant 0 : index
    %15 = vector.load %arg7[%c0_14, %c0_15] : memref<1x256xf32, #tpu.memory_space<vmem>>, vector<1x256xf32>
    %16 = vector.broadcast %15 : vector<1x256xf32> to vector<8x256xf32>
    %17 = arith.addf %14, %16 : vector<8x256xf32>
    %cst_16 = arith.constant 0.000000e+00 : f32
    %18 = vector.broadcast %cst_16 : f32 to vector<8x256xf32>
    %19 = arith.maximumf %17, %18 : vector<8x256xf32>
    %c0_17 = arith.constant 0 : index
    %c0_18 = arith.constant 0 : index
    %20 = vector.load %arg8[%c0_17, %c0_18] : memref<1x256xbf16, #tpu.memory_space<vmem>>, vector<1x256xbf16>
    %21 = arith.truncf %19 : vector<8x256xf32> to vector<8x256xbf16>
    %cst_19 = arith.constant dense<0.000000e+00> : vector<1x8xf32>
    %22 = tpu.matmul %20, %21, %cst_19 {dimension_numbers = #tpu.dot_dimension_numbers<[1], [1], [0], [0], [0, 0, 1, 0], [], []>} : vector<1x256xbf16>, vector<8x256xbf16>, vector<1x8xf32> -> vector<1x8xf32>
    %c0_20 = arith.constant 0 : index
    %c0_21 = arith.constant 0 : index
    %23 = vector.load %arg9[%c0_20, %c0_21] : memref<1x1xf32, #tpu.memory_space<vmem>>, vector<1x1xf32>
    %24 = vector.broadcast %23 : vector<1x1xf32> to vector<1x8xf32>
    %25 = arith.addf %22, %24 : vector<1x8xf32>
    %c0_22 = arith.constant 0 : index
    %c0_23 = arith.constant 0 : index
    %26 = vector.load %arg10[%c0_22, %c0_23] : memref<1x8xf32, #tpu.memory_space<vmem>>, vector<1x8xf32>
    tpu.vector_store %arg10[%c0_22, %c0_23], %25 {strides = array<i32>} : memref<1x8xf32, #tpu.memory_space<vmem>>, vector<1x8xf32>,
    return
  }
  func.func @transform_0(%arg0: i32) -> (i32, i32) {
    %c0_i32 = arith.constant 0 : i32
    %c0_i32_0 = arith.constant 0 : i32
    return %arg0, %c0_i32 : i32, i32
  }
  func.func @transform_1(%arg0: i32) -> (i32, i32) {
    %c0_i32 = arith.constant 0 : i32
    %c0_i32_0 = arith.constant 0 : i32
    return %arg0, %c0_i32 : i32, i32
  }
  func.func @transform_2(%arg0: i32) -> (i32, i32) {
    %c0_i32 = arith.constant 0 : i32
    %c0_i32_0 = arith.constant 0 : i32
    %c0_i32_1 = arith.constant 0 : i32
    return %c0_i32, %c0_i32_0 : i32, i32
  }
  func.func @transform_3(%arg0: i32) -> (i32, i32) {
    %c0_i32 = arith.constant 0 : i32
    %c0_i32_0 = arith.constant 0 : i32
    %c0_i32_1 = arith.constant 0 : i32
    return %c0_i32, %c0_i32_0 : i32, i32
  }
  func.func @transform_4(%arg0: i32) -> (i32, i32) {
    %c0_i32 = arith.constant 0 : i32
    %c0_i32_0 = arith.constant 0 : i32
    %c0_i32_1 = arith.constant 0 : i32
    return %c0_i32, %c0_i32_0 : i32, i32
  }
  func.func @transform_5(%arg0: i32) -> (i32, i32) {
    %c0_i32 = arith.constant 0 : i32
    %c0_i32_0 = arith.constant 0 : i32
    %c0_i32_1 = arith.constant 0 : i32
    return %c0_i32, %c0_i32_0 : i32, i32
  }
  func.func @transform_6(%arg0: i32) -> (i32, i32) {
    %c0_i32 = arith.constant 0 : i32
    %c0_i32_0 = arith.constant 0 : i32
    %c0_i32_1 = arith.constant 0 : i32
    return %c0_i32, %c0_i32_0 : i32, i32
  }
  func.func @transform_7(%arg0: i32) -> (i32, i32) {
    %c0_i32 = arith.constant 0 : i32
    %c0_i32_0 = arith.constant 0 : i32
    %c0_i32_1 = arith.constant 0 : i32
    return %c0_i32, %c0_i32_0 : i32, i32
  }
  func.func @transform_8(%arg0: i32) -> (i32, i32) {
    %c0_i32 = arith.constant 0 : i32
    %c0_i32_0 = arith.constant 0 : i32
    %c0_i32_1 = arith.constant 0 : i32
    return %c0_i32, %c0_i32_0 : i32, i32
  }
  func.func @transform_9(%arg0: i32) -> (i32, i32) {
    %c0_i32 = arith.constant 0 : i32
    %c0_i32_0 = arith.constant 0 : i32
    return %c0_i32, %arg0 : i32, i32
  }
}

</mosaic_0001>

<llo_original>
// kernel: tpu_custom_call.1
$region0: #{tpu_custom_call.1}
  #allocation0 [shape = 'u32[]', space=smem, size = 0x4, offset = 0x4, fixed_abs, tag = 'smem constant byte address 0x4 - core index']
  #allocation1 [shape = 'u32[72,128]{1,0:T(1,128)}', space=vmem, size = 0x9000, scoped, tag = 'internal scratch']
  #allocation2 [shape = 'f32[1,1]{1,0:T(1,128)S(1)}', space=vmem, size = 0x200, scoped, tag = 'scoped memory for tpu_custom_call.1']
  %s0 = inlined_call_operand.vmem [shape: bf16[8,12], index: 0, kind: input, shape index: {}]
  %s1 = inlined_call_operand.vmem [shape: bf16[8,4], index: 1, kind: input, shape index: {}]
  %s2 = inlined_call_operand.hbm [shape: bf16[12,256], index: 2, kind: input, shape index: {}]
  %s3 = inlined_call_operand.hbm [shape: bf16[4,256], index: 3, kind: input, shape index: {}]
  %s4 = inlined_call_operand.vmem [shape: f32[1,256], index: 4, kind: input, shape index: {}]
  %s5 = inlined_call_operand.hbm [shape: bf16[256,256], index: 5, kind: input, shape index: {}]
  %s6 = inlined_call_operand.vmem [shape: f32[1,256], index: 6, kind: input, shape index: {}]
  %s7 = inlined_call_operand.vmem [shape: bf16[1,256], index: 7, kind: input, shape index: {}]
  %s8 = inlined_call_operand.<no memory space> [shape: f32[1,1], index: 8, kind: input, shape index: {}]
  %s9 = inlined_call_operand.hbm [shape: f32[1,8], index: 9, kind: output, shape index: {}]
  %s10 = sld [smem:[#allocation0]]
  $region58: #{tpu_custom_call.1} parent=0
    _
  %s12 = ssub.s32 1, %s10
  %s13 = scalar_select 0, %s12, %s10
  %v14 = vstv %s8
  %15 = vst [vmem:[#allocation2] sm:$0x1] %v14
  $region1: #{tpu_custom_call.1} parent=0
    #allocation3 [shape = 'u8[8192]{0}', space=vmem, size = 0x2000, scoped, tag = 'input window, operand 2, single buffered']
    #allocation4 [shape = 's32[1]{0}', space=sflag, size = 0x4, scoped, tag = 'scoped memory for tpu_custom_call.1']
    #allocation5 [shape = 's32[1]{0}', space=sflag, size = 0x4, scoped, tag = 'scoped memory for tpu_custom_call.1']
    #allocation6 [shape = 'u8[2048]{0}', space=vmem, size = 0x800, scoped, tag = 'input window, operand 3, single buffered']
    #allocation7 [shape = 's32[1]{0}', space=sflag, size = 0x4, scoped, tag = 'scoped memory for tpu_custom_call.1']
    #allocation8 [shape = 'u8[131072]{0}', space=vmem, size = 0x20000, scoped, tag = 'input window, operand 5, single buffered']
    #allocation9 [shape = 'u8[512]{0}', space=vmem, size = 0x400, scoped, tag = 'output window, operand 0, single buffered']
    %16 = vsyncpa [#allocation4], 0
    %17 = vsyncpa [#allocation7], 0
    %18 = vsyncpa [#allocation5], 0
    // Predicated region
    $region2: #{tpu_custom_call.1} parent=1 // pred_check
      _
    $region3: #{tpu_custom_call.1} parent=1 // pred_check_branch
      %20 = sbr.rel (0) target = $region5
    $region4: #{tpu_custom_call.1} parent=1 // pred_region
      _
    $region5: #{tpu_custom_call.1} parent=1 // pred_fallthru
      _
    // Predicated region
    $region6: #{tpu_custom_call.1} parent=1 // pred_check
      _
    $region7: #{tpu_custom_call.1} parent=1 // pred_check_branch
      %22 = sbr.rel (0) target = $region9
    $region8: #{tpu_custom_call.1} parent=1 // pred_region
      _
    $region9: #{tpu_custom_call.1} parent=1 // pred_fallthru
      _
    // Predicated region
    $region10: #{tpu_custom_call.1} parent=1 // pred_check
      _
    $region11: #{tpu_custom_call.1} parent=1 // pred_check_branch
      %24 = sbr.rel (0) target = $region13
    $region12: #{tpu_custom_call.1} parent=1 // pred_region
      %26 = vsyncadd [#allocation4], 0
      %s27 = sshll.u32 %s2, 4
      %s28 = int_to_ptr.hbm [resolvable:$true] %s27
      %s29 = sshll.u32 [#allocation3], 4
      %s30 = int_to_ptr.vmem [resolvable:$true] %s29
      %35 = dma.hbm_to_vmem [thread:$0]  %s28, 256, %s30, [#allocation4], 128, 128, 8
    $region13: #{tpu_custom_call.1} parent=1 // pred_fallthru
      _
    // Predicated region
    $region14: #{tpu_custom_call.1} parent=1 // pred_check
      _
    $region15: #{tpu_custom_call.1} parent=1 // pred_check_branch
      %37 = sbr.rel (0) target = $region17
    $region16: #{tpu_custom_call.1} parent=1 // pred_region
      %39 = vsyncadd [#allocation7], 0
      %s41 = sshll.u32 %s3, 4
      %s42 = int_to_ptr.hbm [resolvable:$true] %s41
      %s43 = sshll.u32 [#allocation6], 4
      %s44 = int_to_ptr.vmem [resolvable:$true] %s43
      %46 = dma.hbm_to_vmem [thread:$0]  %s42, 64, %s44, [#allocation7]
    $region17: #{tpu_custom_call.1} parent=1 // pred_fallthru
      _
    // Predicated region
    $region18: #{tpu_custom_call.1} parent=1 // pred_check
      _
    $region19: #{tpu_custom_call.1} parent=1 // pred_check_branch
      %48 = sbr.rel (0) target = $region21
    $region20: #{tpu_custom_call.1} parent=1 // pred_region
      _
    $region21: #{tpu_custom_call.1} parent=1 // pred_fallthru
      _
    // Predicated region
    $region22: #{tpu_custom_call.1} parent=1 // pred_check
      _
    $region23: #{tpu_custom_call.1} parent=1 // pred_check_branch
      %50 = sbr.rel (0) target = $region25
    $region24: #{tpu_custom_call.1} parent=1 // pred_region
      %52 = vsyncadd [#allocation7], 0
      %s53 = sshll.u32 %s5, 4
      %s54 = int_to_ptr.hbm [resolvable:$true] %s53
      %s55 = sshll.u32 [#allocation8], 4
      %s56 = int_to_ptr.vmem [resolvable:$true] %s55
      %61 = dma.hbm_to_vmem [thread:$0]  %s54, 4096, %s56, [#allocation7], 128, 128, 8
    $region25: #{tpu_custom_call.1} parent=1 // pred_fallthru
      _
    // Predicated region
    $region26: #{tpu_custom_call.1} parent=1 // pred_check
      _
    $region27: #{tpu_custom_call.1} parent=1 // pred_check_branch
      %63 = sbr.rel (0) target = $region29
    $region28: #{tpu_custom_call.1} parent=1 // pred_region
      _
    $region29: #{tpu_custom_call.1} parent=1 // pred_fallthru
      _
    // Predicated region
    $region30: #{tpu_custom_call.1} parent=1 // pred_check
      _
    $region31: #{tpu_custom_call.1} parent=1 // pred_check_branch
      %65 = sbr.rel (0) target = $region33
    $region32: #{tpu_custom_call.1} parent=1 // pred_region
      _
    $region33: #{tpu_custom_call.1} parent=1 // pred_fallthru
      _
    // Predicated region
    $region34: #{tpu_custom_call.1} parent=1 // pred_check
      _
    $region35: #{tpu_custom_call.1} parent=1 // pred_check_branch
      %67 = sbr.rel (0) target = $region37
    $region36: #{tpu_custom_call.1} parent=1 // pred_region
      _
    $region37: #{tpu_custom_call.1} parent=1 // pred_fallthru
      _
    // Predicated region
    $region38: #{tpu_custom_call.1} parent=1 // pred_check
      _
    $region39: #{tpu_custom_call.1} parent=1 // pred_check_branch
      %69 = sbr.rel (0) target = $region41
    $region40: #{tpu_custom_call.1} parent=1 // pred_region
      %71 = dma.done [#allocation4], 256
    $region41: #{tpu_custom_call.1} parent=1 // pred_fallthru
      _
    // Predicated region
    $region42: #{tpu_custom_call.1} parent=1 // pred_check
      _
    $region43: #{tpu_custom_call.1} parent=1 // pred_check_branch
      %73 = sbr.rel (0) target = $region45
    $region44: #{tpu_custom_call.1} parent=1 // pred_region
      %75 = dma.done [#allocation7], 64
    $region45: #{tpu_custom_call.1} parent=1 // pred_fallthru
      _
    // Predicated region
    $region46: #{tpu_custom_call.1} parent=1 // pred_check
      _
    $region47: #{tpu_custom_call.1} parent=1 // pred_check_branch
      %77 = sbr.rel (0) target = $region49
    $region48: #{tpu_custom_call.1} parent=1 // pred_region
      %79 = dma.done [#allocation7], 4096
    $region49: #{tpu_custom_call.1} parent=1 // pred_fallthru
      _
    %v81 = vld [vmem:[%s0] sm:$0xf]
    %v82 = vld [vmem:[#allocation3] sm:$0xff]
    %v83 = vld [vmem:[#allocation3 + $0x8] sm:$0x33]
    %v84 = vld [vmem:[%s1] sm:$0xf]
    %v85 = vld [vmem:[#allocation6] sm:$0xf]
    %87 = vst [vmem:[#allocation1] ss:$4 sm:$0xff] %v85
    %v88 = vld.sshfl [vmem:[#allocation1] sm:$0xff pattern:$0x73625140]
    %v89 = vld.sshfl [vmem:[#allocation1 + $0x8] sm:$0xff pattern:$0x73625140]
    %vm90 = vcmask 31744
    %v92 = vsel %vm90, %v84, 0
    %vm94 = vcmask 1041408
    %v95 = vsel %vm94, %v88, 0
    %v97 = vsel %vm94, %v89, 0
    %99 = vmatpush.bf16.msra.mxu0 0
    %100 = vmatpush.bf16.msra.mxu0 0
    %101 = vmatpush.bf16.msra.mxu0 0
    %102 = vmatpush.bf16.msra.mxu0 0
    %103 = vmatpush.bf16.msra.mxu0 0
    %104 = vmatpush.bf16.msra.mxu0 0
    %105 = vmatpush.bf16.msra.mxu0 0
    %106 = vmatpush.bf16.msra.mxu0 %v95
    %107 = vmatmul.bf16.gmra.mxu0 %v92
    %v108 = vpop.f32.mrf.mxu0
    %v109 = vadd.f32 0.0, %v108
    %v110 = vpop.f32.mrf.mxu0
    %111 = vdwg.mxu0
    %112 = vmatpush.bf16.msra.mxu0 0
    %113 = vmatpush.bf16.msra.mxu0 0
    %114 = vmatpush.bf16.msra.mxu0 0
    %115 = vmatpush.bf16.msra.mxu0 0
    %116 = vmatpush.bf16.msra.mxu0 0
    %117 = vmatpush.bf16.msra.mxu0 0
    %118 = vmatpush.bf16.msra.mxu0 0
    %119 = vmatpush.bf16.msra.mxu0 %v97
    %120 = vmatmul.bf16.gmra.mxu0 %v92
    %v121 = vpop.f32.mrf.mxu0
    %v122 = vadd.f32 0.0, %v121
    %v123 = vpop.f32.mrf.mxu0
    %124 = vdwg.mxu0
    %v127 = vunpack.c.l.b16 %v82
    %v128 = vunpack.c.h.b16 %v82
    %v129 = vunpack.c.l.b16 %v83
    %v130 = vunpack.c.h.b16 %v83
    %v131 = vpack.c.b16 %v129, %v127
    %v132 = vpack.c.b16 %v130, %v128
    %vm133 = vcmask 97280
    %v135 = vsel %vm133, %v81, 0
    %vm137 = vcmask 1045504
    %v139 = vsel %vm137, %v131, 0
    %v142 = vsel %vm137, %v132, 0
    %144 = vmatpush.bf16.msra.mxu0 0
    %145 = vmatpush.bf16.msra.mxu0 0
    %146 = vmatpush.bf16.msra.mxu0 0
    %147 = vmatpush.bf16.msra.mxu0 0
    %148 = vmatpush.bf16.msra.mxu0 0
    %149 = vmatpush.bf16.msra.mxu0 0
    %150 = vmatpush.bf16.msra.mxu0 0
    %151 = vmatpush.bf16.msra.mxu0 %v139
    %152 = vmatmul.bf16.gmra.mxu0 %v135
    %v153 = vpop.f32.mrf.mxu0
    %v154 = vadd.f32 %v109, %v153
    %v155 = vpop.f32.mrf.mxu0
    %156 = vdwg.mxu0
    %157 = vmatpush.bf16.msra.mxu0 0
    %158 = vmatpush.bf16.msra.mxu0 0
    %159 = vmatpush.bf16.msra.mxu0 0
    %160 = vmatpush.bf16.msra.mxu0 0
    %161 = vmatpush.bf16.msra.mxu0 0
    %162 = vmatpush.bf16.msra.mxu0 0
    %163 = vmatpush.bf16.msra.mxu0 0
    %164 = vmatpush.bf16.msra.mxu0 %v142
    %165 = vmatmul.bf16.gmra.mxu0 %v135
    %v166 = vpop.f32.mrf.mxu0
    %v167 = vadd.f32 %v122, %v166
    %v168 = vpop.f32.mrf.mxu0
    %169 = vdwg.mxu0
    %v170 = vld [vmem:[%s4] sm:$0x3]
    %v172 = vperm.slane %v170, 0
    %v173 = vperm.slane %v170, 1
    %v176 = vadd.f32 %v154, %v172
    %v177 = vadd.f32 %v167, %v173
    %v178 = vmax.f32 %v176, 0.0
    %v179 = vmax.f32 %v177, 0.0
    %v180 = vpack.c.bf16 %v178, %v178
    %v181 = vpack.c.bf16 %v179, %v179
    %v182 = vld [vmem:[#allocation8] sm:$0xff]
    %v183 = vld [vmem:[#allocation8 + $0x8] sm:$0xff]
    %v184 = vld [vmem:[#allocation8 + $0x10] sm:$0xff]
    %v185 = vld [vmem:[#allocation8 + $0x18] sm:$0xff]
    %v186 = vld [vmem:[#allocation8 + $0x20] sm:$0xff]
    %v187 = vld [vmem:[#allocation8 + $0x28] sm:$0xff]
    %v188 = vld [vmem:[#allocation8 + $0x30] sm:$0xff]
    %v189 = vld [vmem:[#allocation8 + $0x38] sm:$0xff]
    %v190 = vld [vmem:[#allocation8 + $0x40] sm:$0xff]
    %v191 = vld [vmem:[#allocation8 + $0x48] sm:$0xff]
    %v192 = vld [vmem:[#allocation8 + $0x50] sm:$0xff]
    %v193 = vld [vmem:[#allocation8 + $0x58] sm:$0xff]
    %v194 = vld [vmem:[#allocation8 + $0x60] sm:$0xff]
    %v195 = vld [vmem:[#allocation8 + $0x68] sm:$0xff]
    %v196 = vld [vmem:[#allocation8 + $0x70] sm:$0xff]
    %v197 = vld [vmem:[#allocation8 + $0x78] sm:$0xff]
    %v198 = vld [vmem:[#allocation8 + $0x80] sm:$0xff]
    %v199 = vld [vmem:[#allocation8 + $0x88] sm:$0xff]
    %v200 = vld [vmem:[#allocation8 + $0x90] sm:$0xff]
    %v201 = vld [vmem:[#allocation8 + $0x98] sm:$0xff]
    %v202 = vld [vmem:[#allocation8 + $0xa0] sm:$0xff]
    %v203 = vld [vmem:[#allocation8 + $0xa8] sm:$0xff]
    %v204 = vld [vmem:[#allocation8 + $0xb0] sm:$0xff]
    %v205 = vld [vmem:[#allocation8 + $0xb8] sm:$0xff]
    %v206 = vld [vmem:[#allocation8 + $0xc0] sm:$0xff]
    %v207 = vld [vmem:[#allocation8 + $0xc8] sm:$0xff]
    %v208 = vld [vmem:[#allocation8 + $0xd0] sm:$0xff]
    %v209 = vld [vmem:[#allocation8 + $0xd8] sm:$0xff]
    %v210 = vld [vmem:[#allocation8 + $0xe0] sm:$0xff]
    %v211 = vld [vmem:[#allocation8 + $0xe8] sm:$0xff]
    %v212 = vld [vmem:[#allocation8 + $0xf0] sm:$0xff]
    %v213 = vld [vmem:[#allocation8 + $0xf8] sm:$0xff]
    %v214 = vld [vmem:[%s6] sm:$0x3]
    %v216 = vperm.slane %v214, 0
    %v217 = vperm.slane %v214, 1
    %v252 = vunpack.c.l.b16 %v182
    %v253 = vunpack.c.h.b16 %v182
    %v254 = vunpack.c.l.b16 %v183
    %v255 = vunpack.c.h.b16 %v183
    %v256 = vunpack.c.l.b16 %v184
    %v257 = vunpack.c.h.b16 %v184
    %v258 = vunpack.c.l.b16 %v185
    %v259 = vunpack.c.h.b16 %v185
    %v260 = vunpack.c.l.b16 %v186
    %v261 = vunpack.c.h.b16 %v186
    %v262 = vunpack.c.l.b16 %v187
    %v263 = vunpack.c.h.b16 %v187
    %v264 = vunpack.c.l.b16 %v188
    %v265 = vunpack.c.h.b16 %v188
    %v266 = vunpack.c.l.b16 %v189
    %v267 = vunpack.c.h.b16 %v189
    %v268 = vunpack.c.l.b16 %v190
    %v269 = vunpack.c.h.b16 %v190
    %v270 = vunpack.c.l.b16 %v191
    %v271 = vunpack.c.h.b16 %v191
    %v272 = vunpack.c.l.b16 %v192
    %v273 = vunpack.c.h.b16 %v192
    %v274 = vunpack.c.l.b16 %v193
    %v275 = vunpack.c.h.b16 %v193
    %v276 = vunpack.c.l.b16 %v194
    %v277 = vunpack.c.h.b16 %v194
    %v278 = vunpack.c.l.b16 %v195
    %v279 = vunpack.c.h.b16 %v195
    %v280 = vunpack.c.l.b16 %v196
    %v281 = vunpack.c.h.b16 %v196
    %v282 = vunpack.c.l.b16 %v197
    %v283 = vunpack.c.h.b16 %v197
    %v284 = vunpack.c.l.b16 %v198
    %v285 = vunpack.c.h.b16 %v198
    %v286 = vunpack.c.l.b16 %v199
    %v287 = vunpack.c.h.b16 %v199
    %v288 = vunpack.c.l.b16 %v200
    %v289 = vunpack.c.h.b16 %v200
    %v290 = vunpack.c.l.b16 %v201
    %v291 = vunpack.c.h.b16 %v201
    %v292 = vunpack.c.l.b16 %v202
    %v293 = vunpack.c.h.b16 %v202
    %v294 = vunpack.c.l.b16 %v203
    %v295 = vunpack.c.h.b16 %v203
    %v296 = vunpack.c.l.b16 %v204
    %v297 = vunpack.c.h.b16 %v204
    %v298 = vunpack.c.l.b16 %v205
    %v299 = vunpack.c.h.b16 %v205
    %v300 = vunpack.c.l.b16 %v206
    %v301 = vunpack.c.h.b16 %v206
    %v302 = vunpack.c.l.b16 %v207
    %v303 = vunpack.c.h.b16 %v207
    %v304 = vunpack.c.l.b16 %v208
    %v305 = vunpack.c.h.b16 %v208
    %v306 = vunpack.c.l.b16 %v209
    %v307 = vunpack.c.h.b16 %v209
    %v308 = vunpack.c.l.b16 %v210
    %v309 = vunpack.c.h.b16 %v210
    %v310 = vunpack.c.l.b16 %v211
    %v311 = vunpack.c.h.b16 %v211
    %v312 = vunpack.c.l.b16 %v212
    %v313 = vunpack.c.h.b16 %v212
    %v314 = vunpack.c.l.b16 %v213
    %v315 = vunpack.c.h.b16 %v213
    %v316 = vpack.c.b16 %v254, %v252
    %v317 = vpack.c.b16 %v255, %v253
    %v318 = vpack.c.b16 %v258, %v256
    %v319 = vpack.c.b16 %v259, %v257
    %v320 = vpack.c.b16 %v262, %v260
    %v321 = vpack.c.b16 %v263, %v261
    %v322 = vpack.c.b16 %v266, %v264
    %v323 = vpack.c.b16 %v267, %v265
    %v324 = vpack.c.b16 %v270, %v268
    %v325 = vpack.c.b16 %v271, %v269
    %v326 = vpack.c.b16 %v274, %v272
    %v327 = vpack.c.b16 %v275, %v273
    %v328 = vpack.c.b16 %v278, %v276
    %v329 = vpack.c.b16 %v279, %v277
    %v330 = vpack.c.b16 %v282, %v280
    %v331 = vpack.c.b16 %v283, %v281
    %v332 = vpack.c.b16 %v286, %v284
    %v333 = vpack.c.b16 %v287, %v285
    %v334 = vpack.c.b16 %v290, %v288
    %v335 = vpack.c.b16 %v291, %v289
    %v336 = vpack.c.b16 %v294, %v292
    %v337 = vpack.c.b16 %v295, %v293
    %v338 = vpack.c.b16 %v298, %v296
    %v339 = vpack.c.b16 %v299, %v297
    %v340 = vpack.c.b16 %v302, %v300
    %v341 = vpack.c.b16 %v303, %v301
    %v342 = vpack.c.b16 %v306, %v304
    %v343 = vpack.c.b16 %v307, %v305
    %v344 = vpack.c.b16 %v310, %v308
    %v345 = vpack.c.b16 %v311, %v309
    %v346 = vpack.c.b16 %v314, %v312
    %v347 = vpack.c.b16 %v315, %v313
    %380 = vmatpush.bf16.msra.mxu0 %v330
    %381 = vmatpush.bf16.msra.mxu0 %v328
    %382 = vmatpush.bf16.msra.mxu0 %v326
    %383 = vmatpush.bf16.msra.mxu0 %v324
    %384 = vmatpush.bf16.msra.mxu0 %v322
    %385 = vmatpush.bf16.msra.mxu0 %v320
    %386 = vmatpush.bf16.msra.mxu0 %v318
    %387 = vmatpush.bf16.msra.mxu0 %v316
    %388 = vmatmul.bf16.gmra.mxu0 %v180
    %v389 = vpop.f32.mrf.mxu0
    %v390 = vadd.f32 %v216, %v389
    %v391 = vpop.f32.mrf.mxu0
    %392 = vdwg.mxu0
    %393 = vmatpush.bf16.msra.mxu0 %v346
    %394 = vmatpush.bf16.msra.mxu0 %v344
    %395 = vmatpush.bf16.msra.mxu0 %v342
    %396 = vmatpush.bf16.msra.mxu0 %v340
    %397 = vmatpush.bf16.msra.mxu0 %v338
    %398 = vmatpush.bf16.msra.mxu0 %v336
    %399 = vmatpush.bf16.msra.mxu0 %v334
    %400 = vmatpush.bf16.msra.mxu0 %v332
    %401 = vmatmul.bf16.gmra.mxu0 %v181
    %v402 = vpop.f32.mrf.mxu0
    %v403 = vadd.f32 %v390, %v402
    %v404 = vpop.f32.mrf.mxu0
    %405 = vdwg.mxu0
    %406 = vmatpush.bf16.msra.mxu0 %v331
    %407 = vmatpush.bf16.msra.mxu0 %v329
    %408 = vmatpush.bf16.msra.mxu0 %v327
    %409 = vmatpush.bf16.msra.mxu0 %v325
    %410 = vmatpush.bf16.msra.mxu0 %v323
    %411 = vmatpush.bf16.msra.mxu0 %v321
    %412 = vmatpush.bf16.msra.mxu0 %v319
    %413 = vmatpush.bf16.msra.mxu0 %v317
    %414 = vmatmul.bf16.gmra.mxu0 %v180
    %v415 = vpop.f32.mrf.mxu0
    %v416 = vadd.f32 %v217, %v415
    %v417 = vpop.f32.mrf.mxu0
    %418 = vdwg.mxu0
    %419 = vmatpush.bf16.msra.mxu0 %v347
    %420 = vmatpush.bf16.msra.mxu0 %v345
    %421 = vmatpush.bf16.msra.mxu0 %v343
    %422 = vmatpush.bf16.msra.mxu0 %v341
    %423 = vmatpush.bf16.msra.mxu0 %v339
    %424 = vmatpush.bf16.msra.mxu0 %v337
    %425 = vmatpush.bf16.msra.mxu0 %v335
    %426 = vmatpush.bf16.msra.mxu0 %v333
    %427 = vmatmul.bf16.gmra.mxu0 %v181
    %v428 = vpop.f32.mrf.mxu0
    %v429 = vadd.f32 %v416, %v428
    %v430 = vpop.f32.mrf.mxu0
    %431 = vdwg.mxu0
    %v432 = vmax.f32 %v403, 0.0
    %v433 = vmax.f32 %v429, 0.0
    %v434 = vld [vmem:[%s7] sm:$0x3]
    %v435 = vpack.c.bf16 %v432, %v432
    %v436 = vpack.c.bf16 %v433, %v433
    %v437 = vld [vmem:[#allocation2] sm:$0x1]
    %439 = vset.pattern.permute.xlu0 0
    %440 = vperm.xlu0 %439, %v437
    %v441 = vpop.permute.xlu0 %440
    %v443 = vperm.slane %v441, 0
    %445 = vst [vmem:[#allocation1] ss:$9 sm:$0xff] %v434
    %v446 = vld [vmem:[#allocation1] sm:$0xff]
    %v447 = vld [vmem:[#allocation1 + $0x9] sm:$0xff]
    %450 = vmatpush.bf16.xpose.msra.mxu0 0
    %451 = vmatpush.bf16.xpose.msra.mxu0 0
    %452 = vmatpush.bf16.xpose.msra.mxu0 0
    %453 = vmatpush.bf16.xpose.msra.mxu0 0
    %454 = vmatpush.bf16.xpose.msra.mxu0 0
    %455 = vmatpush.bf16.xpose.msra.mxu0 0
    %456 = vmatpush.bf16.xpose.msra.mxu0 0
    %457 = vmatpush.bf16.xpose.msra.mxu0 %v435
    %458 = vmatmul.bf16.gmra.mxu0 %v446
    %v459 = vpop.f32.mrf.mxu0
    %v460 = vadd.f32 %v443, %v459
    %v461 = vpop.f32.mrf.mxu0
    %462 = vdwg.mxu0
    %463 = vmatpush.bf16.xpose.msra.mxu0 0
    %464 = vmatpush.bf16.xpose.msra.mxu0 0
    %465 = vmatpush.bf16.xpose.msra.mxu0 0
    %466 = vmatpush.bf16.xpose.msra.mxu0 0
    %467 = vmatpush.bf16.xpose.msra.mxu0 0
    %468 = vmatpush.bf16.xpose.msra.mxu0 0
    %469 = vmatpush.bf16.xpose.msra.mxu0 0
    %470 = vmatpush.bf16.xpose.msra.mxu0 %v436
    %471 = vmatmul.bf16.gmra.mxu0 %v447
    %v472 = vpop.f32.mrf.mxu0
    %v473 = vadd.f32 %v460, %v472
    %v474 = vpop.f32.mrf.mxu0
    %475 = vdwg.mxu0
    %vm476 = vcmask 57344
    %477 = vst.msk [vmem:[#allocation9] sm:$0x1] %vm476, %v473
    // Predicated region
    $region50: #{tpu_custom_call.1} parent=1 // pred_check
      _
    $region51: #{tpu_custom_call.1} parent=1 // pred_check_branch
      %479 = sbr.rel (0) target = $region53
    $region52: #{tpu_custom_call.1} parent=1 // pred_region
      %481 = vsyncadd [#allocation5], 0
      %s483 = sshll.u32 [#allocation9], 4
      %s484 = int_to_ptr.vmem [resolvable:$true] %s483
      %s485 = sshll.u32 %s9, 4
      %s486 = int_to_ptr.hbm [resolvable:$true] %s485
      %488 = dma.vmem_to_hbm [thread:$0]  %s484, 16, %s486, [#allocation5]
    $region53: #{tpu_custom_call.1} parent=1 // pred_fallthru
      _
    // Predicated region
    $region54: #{tpu_custom_call.1} parent=1 // pred_check
      _
    $region55: #{tpu_custom_call.1} parent=1 // pred_check_branch
      %490 = sbr.rel (0) target = $region57
    $region56: #{tpu_custom_call.1} parent=1 // pred_region
      %492 = dma.done [#allocation5], 16
    $region57: #{tpu_custom_call.1} parent=1 // pred_fallthru
      _
    %493 = vsyncpa [#allocation4], 1
    %494 = vsyncpa [#allocation7], 1
    %495 = vsyncpa [#allocation5], 1

</llo_original>
